<compile_context>
chip_gen: v5e
topology: v5e:2x2
jax: 0.10.0
libtpu: 0.0.40
codegen_flags: <defaults>
</compile_context>

<pallas_src>
import math

import jax
import jax.numpy as jnp
from jax.experimental import pallas as pl
from jax.experimental.pallas import tpu as pltpu


# ----------------------------------------------------------------------------
# Kernel 1: row-tiled linear layer  y = x @ w_t + b   (w_t is (in, out))
# ----------------------------------------------------------------------------
def _linear_kernel(x_ref, w_ref, b_ref, o_ref):
    # x_ref: (tm, K) bf16; w_ref: (K, N) bf16; b_ref: (1, N) f32; o_ref: (tm, N)
    y = jnp.dot(x_ref[...], w_ref[...], preferred_element_type=jnp.float32)
    o_ref[...] = (y + b_ref[...]).astype(o_ref.dtype)


def _linear(x, w_t, b, *, out_dtype, tm=256):
    """x: (M, K) bf16, w_t: (K, N) bf16, b: (1, N) f32 -> (M, N) out_dtype."""
    M, K = x.shape
    N = w_t.shape[1]
    tm = min(tm, M)
    grid = (pl.cdiv(M, tm),)
    return pl.pallas_call(
        _linear_kernel,
        out_shape=jax.ShapeDtypeStruct((M, N), out_dtype),
        grid_spec=pltpu.PrefetchScalarGridSpec(
            num_scalar_prefetch=0,
            grid=grid,
            in_specs=[
                pl.BlockSpec((tm, K), lambda i: (i, 0)),
                pl.BlockSpec((K, N), lambda i: (0, 0)),   # resident weight
                pl.BlockSpec((1, N), lambda i: (0, 0)),
            ],
            out_specs=pl.BlockSpec((tm, N), lambda i: (i, 0)),
        ),
        compiler_params=pltpu.CompilerParams(dimension_semantics=("parallel",)),
    )(x, w_t, b)


# ----------------------------------------------------------------------------
# Kernel 2: attention core  softmax(Q K^T + mask) V   for a block of heads
# ----------------------------------------------------------------------------
def _attn_kernel(q_ref, k_ref, v_ref, m_ref, o_ref):
    """q_ref: (1, hb, tq, d_k) bf16 (already scaled by 1/sqrt(d_k) via Wq)
       k_ref/v_ref: (1, hb, T2, d_k) bf16
       m_ref: (1, 1|tq, T2) bf16 keep mask (1 = keep, 0 = masked)
       o_ref: (1, hb, tq, d_k) bf16 context."""
    f32 = jnp.float32
    bf16 = jnp.bfloat16

    q = q_ref[0]                                              # (hb, tq, d_k)
    k = k_ref[0]                                              # (hb, T2, d_k)
    v = v_ref[0]

    # scores, contracting last dims (no explicit K transpose)
    s = jnp.einsum('hqd,hkd->hqk', q, k,
                   preferred_element_type=f32)                # (hb, tq, T2)

    # ESPnet masking folded into one FMA + one multiply:
    #   masked_fill(min_value) -> softmax -> masked_fill(0.0)
    keep = m_ref[...].astype(f32)                             # (1, 1|tq, T2)
    s = s + (keep - f32(1.0)) * f32(1e30)

    s = s - jnp.max(s, axis=-1, keepdims=True)
    e = jnp.exp(s)
    p = (e * keep) * pl.reciprocal(jnp.sum(e, axis=-1, keepdims=True),
                                   approx=True)

    ctx = jnp.einsum('hqk,hkd->hqd', p.astype(bf16), v,
                     preferred_element_type=f32)              # (hb, tq, d_k)
    o_ref[0] = ctx.astype(o_ref.dtype)


def _attention_core(qh, kh, vh, keep):
    """qh: (B, H, T1, d_k) bf16, kh/vh: (B, H, T2, d_k) bf16,
       keep: (B, 1|T1, T2) bf16 -> ctx (B, H, T1, d_k) bf16."""
    B, H, T1, d_k = qh.shape
    T2 = kh.shape[2]

    # q-tile: prefer large MXU-friendly tiles; fall back to full T1.
    tq = T1
    for cand in (512, 256, 128):
        if T1 % cand == 0:
            tq = cand
            break

    # heads per block: as many as fit a modest f32 score-tile budget.
    hb = H
    while hb > 1 and (H % hb != 0 or hb * tq * T2 * 4 > 8 * 1024 * 1024):
        hb -= 1

    grid = (B, H // hb, T1 // tq)

    if keep.shape[1] == 1:
        m_spec = pl.BlockSpec((1, 1, T2), lambda b, h, t: (b, 0, 0))
    else:
        m_spec = pl.BlockSpec((1, tq, T2), lambda b, h, t: (b, t, 0))

    return pl.pallas_call(
        _attn_kernel,
        out_shape=jax.ShapeDtypeStruct((B, H, T1, d_k), jnp.bfloat16),
        grid_spec=pltpu.PrefetchScalarGridSpec(
            num_scalar_prefetch=0,
            grid=grid,
            in_specs=[
                pl.BlockSpec((1, hb, tq, d_k), lambda b, h, t: (b, h, t, 0)),
                pl.BlockSpec((1, hb, T2, d_k), lambda b, h, t: (b, h, 0, 0)),
                pl.BlockSpec((1, hb, T2, d_k), lambda b, h, t: (b, h, 0, 0)),
                m_spec,
            ],
            out_specs=pl.BlockSpec((1, hb, tq, d_k), lambda b, h, t: (b, h, t, 0)),
        ),
        # q-tile axis innermost + "arbitrary" keeps the K/V blocks resident
        # across q-tiles; batch / head-block axes supply megacore parallelism.
        compiler_params=pltpu.CompilerParams(
            dimension_semantics=("parallel", "parallel", "arbitrary")),
    )(qh, kh, vh, keep)


# ----------------------------------------------------------------------------
# Wrapper: full MultiHeadedAttention.forward
# ----------------------------------------------------------------------------
def multi_headed_attention(query, key, value, mask, params, *, n_head):
    """query: (B,T1,F), key/value: (B,T2,F), mask: (B,1,T2) or (B,T1,T2) (or None).

    params use the PyTorch nn.Linear layout: W (out,in), b (out,).
    """
    B, T1, F = query.shape
    _, T2, _ = key.shape
    assert F % n_head == 0
    H = n_head
    d_k = F // H
    if mask is not None:
        assert mask.shape in ((B, 1, T2), (B, T1, T2)), \
            "mask must be (B,1,T2) or (B,T1,T2)"

    bf16 = jnp.bfloat16
    f32 = jnp.float32
    scale = 1.0 / math.sqrt(d_k)

    # PyTorch Linear computes x @ W.T + b; pre-transpose to (in, out) so the
    # kernels do a plain (M,K)x(K,N) matmul.  Fold 1/sqrt(d_k) into Wq / bq.
    wq_t = (params["wq"] * scale).T.astype(bf16)
    wk_t = params["wk"].T.astype(bf16)
    wv_t = params["wv"].T.astype(bf16)
    wo_t = params["wo"].T.astype(bf16)
    bq = (params["bq"] * scale).reshape(1, F).astype(f32)
    bk = params["bk"].reshape(1, F).astype(f32)
    bv = params["bv"].reshape(1, F).astype(f32)
    bo = params["bo"].reshape(1, F).astype(f32)

    # bf16 activations: halves HBM->VMEM DMA for every kernel input.
    xq = query.reshape(B * T1, F).astype(bf16)
    xk = key.reshape(B * T2, F).astype(bf16)
    xv = value.reshape(B * T2, F).astype(bf16)

    # --- Q/K/V projections: one full-width (F,F) GEMM each, computed once ---
    qp = _linear(xq, wq_t, bq, out_dtype=bf16)       # (B*T1, F), already scaled
    kp = _linear(xk, wk_t, bk, out_dtype=bf16)       # (B*T2, F)
    vp = _linear(xv, wv_t, bv, out_dtype=bf16)       # (B*T2, F)

    # head-major relayout (layout plumbing only; done by XLA, once per call)
    qh = qp.reshape(B, T1, H, d_k).transpose(0, 2, 1, 3)
    kh = kp.reshape(B, T2, H, d_k).transpose(0, 2, 1, 3)
    vh = vp.reshape(B, T2, H, d_k).transpose(0, 2, 1, 3)

    # bf16 keep mask (1 = keep, 0 = masked); mask=None -> plain softmax.
    if mask is None:
        keep = jnp.ones((B, 1, T2), bf16)
    else:
        keep = (mask != 0).astype(bf16)

    # --- attention core ---
    ctx = _attention_core(qh, kh, vh, keep)          # (B, H, T1, d_k) bf16

    # --- output projection: single K = F GEMM ---
    x = ctx.transpose(0, 2, 1, 3).reshape(B * T1, F)
    out = _linear(x, wo_t, bo, out_dtype=query.dtype)
    return out.reshape(B, T1, F)


# ----------------------------------------------------------------------------
# Pure-JAX reference mirroring the PyTorch forward (bf16 matmul inputs, f32
# accumulation — same MXU precision as the kernels).
# ----------------------------------------------------------------------------
def _reference(query, key, value, mask, params, *, n_head):
    B, T1, F = query.shape
    d_k = F // n_head
    bf16 = jnp.bfloat16
    f32 = jnp.float32

    def lin(x, w, b):
        return jnp.einsum("bti,oi->bto", x.astype(bf16), w.astype(bf16),
                          preferred_element_type=f32) + b

    q = lin(query, params["wq"], params["bq"]).reshape(B, T1, n_head, d_k)
    k = lin(key, params["wk"], params["bk"]).reshape(B, -1, n_head, d_k)
    v = lin(value, params["wv"], params["bv"]).reshape(B, -1, n_head, d_k)
    q = jnp.transpose(q, (0, 2, 1, 3)) * (1.0 / math.sqrt(d_k))
    k = jnp.transpose(k, (0, 2, 1, 3))
    v = jnp.transpose(v, (0, 2, 1, 3))

    scores = jnp.einsum("bhqd,bhkd->bhqk", q.astype(bf16), k.astype(bf16),
                        preferred_element_type=f32)
    if mask is not None:
        m0 = (mask[:, None, :, :] == 0)                # (B,1,1,T2) or (B,1,T1,T2)
        min_value = float(jnp.finfo(jnp.float32).min)
        scores = jnp.where(m0, min_value, scores)
        attn = jax.nn.softmax(scores, axis=-1)
        attn = jnp.where(m0, 0.0, attn)
    else:
        attn = jax.nn.softmax(scores, axis=-1)

    x = jnp.einsum("bhqk,bhkd->bhqd", attn.astype(bf16), v.astype(bf16),
                   preferred_element_type=f32)
    x = jnp.transpose(x, (0, 2, 1, 3)).reshape(B, T1, F)
    return jnp.einsum("bti,oi->bto", x.astype(bf16), params["wo"].astype(bf16),
                      preferred_element_type=f32) + params["bo"]


if __name__ == "__main__":
    B, T, F, H = 2, 8, 32, 4  # batch, seq, n_feat, n_head

    key0 = jax.random.PRNGKey(0)
    ks = jax.random.split(key0, 12)

    # Deterministic parameter init (PyTorch Linear layout: W (out,in), b (out,))
    s = 1.0 / math.sqrt(F)
    params = {
        "wq": jax.random.uniform(ks[0], (F, F), jnp.float32, -s, s),
        "bq": jax.random.uniform(ks[1], (F,), jnp.float32, -s, s),
        "wk": jax.random.uniform(ks[2], (F, F), jnp.float32, -s, s),
        "bk": jax.random.uniform(ks[3], (F,), jnp.float32, -s, s),
        "wv": jax.random.uniform(ks[4], (F, F), jnp.float32, -s, s),
        "bv": jax.random.uniform(ks[5], (F,), jnp.float32, -s, s),
        "wo": jax.random.uniform(ks[6], (F, F), jnp.float32, -s, s),
        "bo": jax.random.uniform(ks[7], (F,), jnp.float32, -s, s),
    }

    query = jax.random.normal(ks[8], (B, T, F), jnp.float32)
    key_t = jax.random.normal(ks[9], (B, T, F), jnp.float32)
    value = jax.random.normal(ks[10], (B, T, F), jnp.float32)

    # 1) padding-style mask: (B, 1, T2), 1 = valid, 0 = padded
    lengths = jnp.array([T, 5], dtype=jnp.int32)
    mask_pad = (jnp.arange(T)[None, None, :] < lengths[:, None, None]).astype(jnp.int32)

    out = multi_headed_attention(query, key_t, value, mask_pad, params, n_head=H)
    out = jax.block_until_ready(out)
    ref = _reference(query, key_t, value, mask_pad, params, n_head=H)
    assert out.shape == (B, T, F)
    assert jnp.allclose(out, ref, atol=2e-2, rtol=2e-2), "padding-mask mismatch"

    # 2) (B, T1, T2) causal mask path (also supported by ESPnet forward)
    mask_causal = jnp.tile(jnp.tril(jnp.ones((T, T), jnp.int32))[None], (B, 1, 1))
    out_c = multi_headed_attention(query, key_t, value, mask_causal, params, n_head=H)
    out_c = jax.block_until_ready(out_c)
    ref_c = _reference(query, key_t, value, mask_causal, params, n_head=H)
    assert jnp.allclose(out_c, ref_c, atol=2e-2, rtol=2e-2), "causal-mask mismatch"

    # 3) mask=None path (plain softmax)
    out_n = multi_headed_attention(query, key_t, value, None, params, n_head=H)
    out_n = jax.block_until_ready(out_n)
    ref_n = _reference(query, key_t, value, None, params, n_head=H)
    assert jnp.allclose(out_n, ref_n, atol=2e-2, rtol=2e-2), "no-mask mismatch"

    print("KERNEL_OK")
</pallas_src>

<mosaic_0001>
module attributes {stable_mosaic.version = 11 : i64} {
  func.func @_linear_kernel(%arg0: i32, %arg1: memref<16x32xbf16, #tpu.memory_space<vmem>>, %arg2: memref<32x32xbf16, #tpu.memory_space<vmem>>, %arg3: memref<1x32xf32, #tpu.memory_space<vmem>>, %arg4: memref<16x32xbf16, #tpu.memory_space<vmem>>) attributes {dimension_semantics = [#tpu.dimension_semantics<parallel>], iteration_bounds = array<i64: 1>, scalar_prefetch = 0 : i64, scratch_operands = 0 : i64, tpu.core_type = #tpu.core_type<tc>, window_params = [{transform_indices = @transform_0, window_bounds = array<i64: 16, 32>}, {pipeline_mode = #tpu.pipeline_mode<synchronous>, transform_indices = @transform_1, window_bounds = array<i64: 32, 32>}, {pipeline_mode = #tpu.pipeline_mode<synchronous>, transform_indices = @transform_2, window_bounds = array<i64: 1, 32>}, {transform_indices = @transform_3, window_bounds = array<i64: 16, 32>}]} {
    %c0 = arith.constant 0 : index
    %c0_0 = arith.constant 0 : index
    %0 = vector.load %arg1[%c0, %c0_0] : memref<16x32xbf16, #tpu.memory_space<vmem>>, vector<16x32xbf16>
    %c0_1 = arith.constant 0 : index
    %c0_2 = arith.constant 0 : index
    %1 = vector.load %arg2[%c0_1, %c0_2] : memref<32x32xbf16, #tpu.memory_space<vmem>>, vector<32x32xbf16>
    %cst = arith.constant dense<0.000000e+00> : vector<16x32xf32>
    %2 = tpu.matmul %0, %1, %cst {dimension_numbers = #tpu.dot_dimension_numbers<[1], [0], [0], [1], [0, 0, 1, 1], [], []>} : vector<16x32xbf16>, vector<32x32xbf16>, vector<16x32xf32> -> vector<16x32xf32>
    %c0_3 = arith.constant 0 : index
    %c0_4 = arith.constant 0 : index
    %3 = vector.load %arg3[%c0_3, %c0_4] : memref<1x32xf32, #tpu.memory_space<vmem>>, vector<1x32xf32>
    %4 = vector.broadcast %3 : vector<1x32xf32> to vector<16x32xf32>
    %5 = arith.addf %2, %4 : vector<16x32xf32>
    %6 = arith.truncf %5 : vector<16x32xf32> to vector<16x32xbf16>
    %c0_5 = arith.constant 0 : index
    %c0_6 = arith.constant 0 : index
    %7 = vector.load %arg4[%c0_5, %c0_6] : memref<16x32xbf16, #tpu.memory_space<vmem>>, vector<16x32xbf16>
    tpu.vector_store %arg4[%c0_5, %c0_6], %6 {strides = array<i32>} : memref<16x32xbf16, #tpu.memory_space<vmem>>, vector<16x32xbf16>,
    return
  }
  func.func @transform_0(%arg0: i32) -> (i32, i32) {
    %c0_i32 = arith.constant 0 : i32
    %c0_i32_0 = arith.constant 0 : i32
    return %arg0, %c0_i32 : i32, i32
  }
  func.func @transform_1(%arg0: i32) -> (i32, i32) {
    %c0_i32 = arith.constant 0 : i32
    %c0_i32_0 = arith.constant 0 : i32
    %c0_i32_1 = arith.constant 0 : i32
    return %c0_i32, %c0_i32_0 : i32, i32
  }
  func.func @transform_2(%arg0: i32) -> (i32, i32) {
    %c0_i32 = arith.constant 0 : i32
    %c0_i32_0 = arith.constant 0 : i32
    %c0_i32_1 = arith.constant 0 : i32
    return %c0_i32, %c0_i32_0 : i32, i32
  }
  func.func @transform_3(%arg0: i32) -> (i32, i32) {
    %c0_i32 = arith.constant 0 : i32
    %c0_i32_0 = arith.constant 0 : i32
    return %arg0, %c0_i32 : i32, i32
  }
}

</mosaic_0001>

<llo_original>
// kernel: tpu_custom_call.1
$region0: #{tpu_custom_call.1}
  #allocation0 [shape = 'u32[]', space=smem, size = 0x4, offset = 0x4, fixed_abs, tag = 'smem constant byte address 0x4 - core index']
  #allocation1 [shape = 'u32[72,128]{1,0:T(1,128)}', space=vmem, size = 0x9000, scoped, tag = 'internal scratch']
  %s0 = inlined_call_operand.hbm [shape: bf16[16,32], index: 0, kind: input, shape index: {}]
  %s1 = inlined_call_operand.hbm [shape: bf16[32,32], index: 1, kind: input, shape index: {}]
  %s2 = inlined_call_operand.vmem [shape: f32[1,32], index: 2, kind: input, shape index: {}]
  %s3 = inlined_call_operand.hbm [shape: bf16[16,32], index: 3, kind: output, shape index: {}]
  %s4 = sld [smem:[#allocation0]]
  $region30: #{tpu_custom_call.1} parent=0
    _
  %s6 = ssub.s32 1, %s4
  %s7 = scalar_select 0, %s6, %s4
  $region1: #{tpu_custom_call.1} parent=0
    #allocation2 [shape = 'u8[4096]{0}', space=vmem, size = 0x1000, scoped, tag = 'input window, operand 0, single buffered']
    #allocation3 [shape = 's32[1]{0}', space=sflag, size = 0x4, scoped, tag = 'scoped memory for tpu_custom_call.1']
    #allocation4 [shape = 's32[1]{0}', space=sflag, size = 0x4, scoped, tag = 'scoped memory for tpu_custom_call.1']
    #allocation5 [shape = 'u8[8192]{0}', space=vmem, size = 0x2000, scoped, tag = 'input window, operand 1, single buffered']
    #allocation6 [shape = 's32[1]{0}', space=sflag, size = 0x4, scoped, tag = 'scoped memory for tpu_custom_call.1']
    #allocation7 [shape = 'u8[4096]{0}', space=vmem, size = 0x1000, scoped, tag = 'output window, operand 0, single buffered']
    %8 = vsyncpa [#allocation3], 0
    %9 = vsyncpa [#allocation6], 0
    %10 = vsyncpa [#allocation4], 0
    // Predicated region
    $region2: #{tpu_custom_call.1} parent=1 // pred_check
      _
    $region3: #{tpu_custom_call.1} parent=1 // pred_check_branch
      %12 = sbr.rel (0) target = $region5
    $region4: #{tpu_custom_call.1} parent=1 // pred_region
      %14 = vsyncadd [#allocation3], 0
      %s15 = sshll.u32 %s0, 4
      %s16 = int_to_ptr.hbm [resolvable:$true] %s15
      %s17 = sshll.u32 [#allocation2], 4
      %s18 = int_to_ptr.vmem [resolvable:$true] %s17
      %23 = dma.hbm_to_vmem [thread:$0]  %s16, 128, %s18, [#allocation3], 64, 64, 4
    $region5: #{tpu_custom_call.1} parent=1 // pred_fallthru
      _
    // Predicated region
    $region6: #{tpu_custom_call.1} parent=1 // pred_check
      _
    $region7: #{tpu_custom_call.1} parent=1 // pred_check_branch
      %25 = sbr.rel (0) target = $region9
    $region8: #{tpu_custom_call.1} parent=1 // pred_region
      %27 = vsyncadd [#allocation6], 0
      %s28 = sshll.u32 %s1, 4
      %s29 = int_to_ptr.hbm [resolvable:$true] %s28
      %s30 = sshll.u32 [#allocation5], 4
      %s31 = int_to_ptr.vmem [resolvable:$true] %s30
      %36 = dma.hbm_to_vmem [thread:$0]  %s29, 256, %s31, [#allocation6], 64, 64, 4
    $region9: #{tpu_custom_call.1} parent=1 // pred_fallthru
      _
    // Predicated region
    $region10: #{tpu_custom_call.1} parent=1 // pred_check
      _
    $region11: #{tpu_custom_call.1} parent=1 // pred_check_branch
      %38 = sbr.rel (0) target = $region13
    $region12: #{tpu_custom_call.1} parent=1 // pred_region
      _
    $region13: #{tpu_custom_call.1} parent=1 // pred_fallthru
      _
    // Predicated region
    $region14: #{tpu_custom_call.1} parent=1 // pred_check
      _
    $region15: #{tpu_custom_call.1} parent=1 // pred_check_branch
      %40 = sbr.rel (0) target = $region17
    $region16: #{tpu_custom_call.1} parent=1 // pred_region
      %42 = dma.done [#allocation3], 128
    $region17: #{tpu_custom_call.1} parent=1 // pred_fallthru
      _
    // Predicated region
    $region18: #{tpu_custom_call.1} parent=1 // pred_check
      _
    $region19: #{tpu_custom_call.1} parent=1 // pred_check_branch
      %44 = sbr.rel (0) target = $region21
    $region20: #{tpu_custom_call.1} parent=1 // pred_region
      %46 = dma.done [#allocation6], 256
    $region21: #{tpu_custom_call.1} parent=1 // pred_fallthru
      _
    %v48 = vld [vmem:[#allocation2] sm:$0xf]
    %v49 = vld [vmem:[#allocation2 + $0x4] sm:$0xf]
    %v50 = vld [vmem:[#allocation5] sm:$0xf]
    %v51 = vld [vmem:[#allocation5 + $0x4] sm:$0xf]
    %v52 = vld [vmem:[#allocation5 + $0x8] sm:$0xf]
    %v53 = vld [vmem:[#allocation5 + $0xc] sm:$0xf]
    %v54 = vld [vmem:[%s2] sm:$0x1]
    %v56 = vperm.slane %v54, 0
    %v60 = vunpack.c.l.b16 %v48
    %v61 = vunpack.c.l.b16 %v49
    %v62 = vpack.c.b16 %v61, %v60
    %v67 = vunpack.c.l.b16 %v50
    %v68 = vunpack.c.l.b16 %v51
    %v69 = vunpack.c.l.b16 %v52
    %v70 = vunpack.c.l.b16 %v53
    %v71 = vpack.c.b16 %v68, %v67
    %v72 = vpack.c.b16 %v70, %v69
    %vm75 = vcmask 261120
    %v77 = vsel %vm75, %v62, 0
    %79 = vmatpush.bf16.msra.mxu0 0
    %80 = vmatpush.bf16.msra.mxu0 0
    %81 = vmatpush.bf16.msra.mxu0 0
    %82 = vmatpush.bf16.msra.mxu0 0
    %83 = vmatpush.bf16.msra.mxu0 0
    %84 = vmatpush.bf16.msra.mxu0 0
    %85 = vmatpush.bf16.msra.mxu0 %v72
    %86 = vmatpush.bf16.msra.mxu0 %v71
    %87 = vmatmul.bf16.gmra.mxu0 %v77
    %v88 = vpop.f32.mrf.mxu0
    %v89 = vadd.f32 %v56, %v88
    %v90 = vpop.f32.mrf.mxu0
    %v91 = vadd.f32 %v56, %v90
    %92 = vdwg.mxu0
    %v93 = vpack.c.bf16 %v89, %v89
    %v94 = vpack.c.bf16 %v91, %v91
    %vm95 = vcmask 257024
    %96 = vst.msk [vmem:[#allocation7] sm:$0xf] %vm95, %v93
    %97 = vst.msk [vmem:[#allocation7 + $0x4] sm:$0xf] %vm95, %v94
    // Predicated region
    $region22: #{tpu_custom_call.1} parent=1 // pred_check
      _
    $region23: #{tpu_custom_call.1} parent=1 // pred_check_branch
      %99 = sbr.rel (0) target = $region25
    $region24: #{tpu_custom_call.1} parent=1 // pred_region
      %101 = vsyncadd [#allocation4], 0
      %s102 = sshll.u32 [#allocation7], 4
      %s103 = int_to_ptr.vmem [resolvable:$true] %s102
      %s104 = sshll.u32 %s3, 4
      %s105 = int_to_ptr.hbm [resolvable:$true] %s104
      %110 = dma.vmem_to_hbm [thread:$0]  %s103, 128, %s105, [#allocation4], 64, 64, 4
    $region25: #{tpu_custom_call.1} parent=1 // pred_fallthru
      _
    // Predicated region
    $region26: #{tpu_custom_call.1} parent=1 // pred_check
      _
    $region27: #{tpu_custom_call.1} parent=1 // pred_check_branch
      %112 = sbr.rel (0) target = $region29
    $region28: #{tpu_custom_call.1} parent=1 // pred_region
      %114 = dma.done [#allocation4], 128
    $region29: #{tpu_custom_call.1} parent=1 // pred_fallthru
      _
    %115 = vsyncpa [#allocation3], 1
    %116 = vsyncpa [#allocation6], 1
    %117 = vsyncpa [#allocation4], 1

</llo_original>
